<compile_context>
chip_gen: v7x
topology: tpu7x:2x2x1
jax: 0.10.0
libtpu: 0.0.40
codegen_flags: <defaults>
</compile_context>

<pallas_src>
import functools

import jax
import jax.numpy as jnp
from jax.experimental import pallas as pl
from jax.experimental.pallas import tpu as pltpu


def _round_up(n: int, m: int) -> int:
    return pl.cdiv(n, m) * m


def linear_kernel(xt_ref, w_ref, b_ref, ot_ref):
    """Computes o[:, lanes] = W @ x[:, lanes] + b with the batch on the lane axis."""
    xt = xt_ref[...]                       # (in_dim, TILE_B)   — lane-dense tile
    w = w_ref[...]                         # (out_dim, in_dim)  — VMEM-resident
    b = b_ref[...]                         # (out_dim, 1)       — VMEM-resident
    in_dim = w.shape[1]

    # K = in_dim contraction as broadcast FMAs on the VPU; bias folded into the first
    # accumulator term. f32 accumulation regardless of I/O dtype.
    acc = b.astype(jnp.float32) + (
        w[:, 0:1].astype(jnp.float32) * xt[0:1, :].astype(jnp.float32)
    )
    for k in range(1, in_dim):
        acc = acc + (
            w[:, k:k + 1].astype(jnp.float32) * xt[k:k + 1, :].astype(jnp.float32)
        )

    ot_ref[...] = acc.astype(ot_ref.dtype)


@functools.partial(jax.jit, static_argnames=("tile_b",))
def simple_model_forward(x, weight, bias, *, tile_b=512):
    """x: (B, in_dim); weight: (out_dim, in_dim) (PyTorch layout); bias: (out_dim,).

    Returns x @ weight.T + bias, shape (B, out_dim).
    """
    B, in_dim = x.shape
    out_dim = weight.shape[0]
    lane = 128

    # Tile the (padded) batch in lane-multiple chunks; single tile for small B.
    tile = max(lane, (min(int(tile_b), _round_up(B, lane)) // lane) * lane)
    b_pad = _round_up(B, tile)

    x_t = x.T                                          # (in_dim, B)
    if b_pad != B:
        x_t = jnp.pad(x_t, ((0, 0), (0, b_pad - B)))   # (in_dim, B_pad)
    b2 = bias.reshape(out_dim, 1)

    out_t = pl.pallas_call(
        linear_kernel,
        out_shape=jax.ShapeDtypeStruct((out_dim, b_pad), x.dtype),
        grid_spec=pl.GridSpec(
            grid=(b_pad // tile,),
            in_specs=[
                pl.BlockSpec((in_dim, tile), lambda i: (0, i)),     # streamed x tiles
                pl.BlockSpec((out_dim, in_dim), lambda i: (0, 0)),  # resident weight
                pl.BlockSpec((out_dim, 1), lambda i: (0, 0)),       # resident bias
            ],
            out_specs=pl.BlockSpec((out_dim, tile), lambda i: (0, i)),
        ),
        compiler_params=pltpu.CompilerParams(
            # Batch tiles are independent -> shard across TensorCores (v7x megacore).
            dimension_semantics=("parallel",),
        ),
    )(x_t, weight, b2)

    return out_t[:, :B].T                              # back to (B, out_dim)


if __name__ == "__main__":
    input_dim = 4
    action_dim = 2
    out_dim = action_dim * 2
    batch = 2

    key = jax.random.PRNGKey(0)
    kx, kw, kb, kx2 = jax.random.split(key, 4)

    # Deterministic params mimicking PyTorch nn.Linear default init:
    # uniform(-1/sqrt(in_dim), 1/sqrt(in_dim)).
    bound = 1.0 / (input_dim ** 0.5)
    weight = jax.random.uniform(kw, (out_dim, input_dim), jnp.float32, -bound, bound)
    bias = jax.random.uniform(kb, (out_dim,), jnp.float32, -bound, bound)

    # Small-shape check (batch=2), matching the module's intended usage.
    x = jax.random.normal(kx, (batch, input_dim), jnp.float32)
    out = jax.block_until_ready(simple_model_forward(x, weight, bias))
    ref = x @ weight.T + bias
    assert out.shape == (batch, out_dim)
    assert jnp.allclose(out, ref, atol=1e-5, rtol=1e-5)

    # Larger batch to exercise the batch-tiled grid (multiple steps + pad slice-back).
    big_b = 300
    x2 = jax.random.normal(kx2, (big_b, input_dim), jnp.float32)
    out2 = jax.block_until_ready(simple_model_forward(x2, weight, bias, tile_b=128))
    ref2 = x2 @ weight.T + bias
    assert out2.shape == (big_b, out_dim)
    assert jnp.allclose(out2, ref2, atol=1e-5, rtol=1e-5)

    print("KERNEL_OK")
</pallas_src>

<mosaic_0001>
module attributes {stable_mosaic.version = 11 : i64} {
  func.func @linear_kernel(%arg0: i32, %arg1: memref<4x128xf32, #tpu.memory_space<vmem>>, %arg2: memref<4x4xf32, #tpu.memory_space<vmem>>, %arg3: memref<4x1xf32, #tpu.memory_space<vmem>>, %arg4: memref<4x128xf32, #tpu.memory_space<vmem>>) attributes {dimension_semantics = [#tpu.dimension_semantics<parallel>], iteration_bounds = array<i64: 1>, scalar_prefetch = 0 : i64, scratch_operands = 0 : i64, tpu.core_type = #tpu.core_type<tc>, window_params = [{transform_indices = @transform_0, window_bounds = array<i64: 4, 128>}, {pipeline_mode = #tpu.pipeline_mode<synchronous>, transform_indices = @transform_1, window_bounds = array<i64: 4, 4>}, {pipeline_mode = #tpu.pipeline_mode<synchronous>, transform_indices = @transform_2, window_bounds = array<i64: 4, 1>}, {transform_indices = @transform_3, window_bounds = array<i64: 4, 128>}]} {
    %c0 = arith.constant 0 : index
    %c0_0 = arith.constant 0 : index
    %0 = vector.load %arg1[%c0, %c0_0] : memref<4x128xf32, #tpu.memory_space<vmem>>, vector<4x128xf32>
    %c0_1 = arith.constant 0 : index
    %c0_2 = arith.constant 0 : index
    %1 = vector.load %arg2[%c0_1, %c0_2] : memref<4x4xf32, #tpu.memory_space<vmem>>, vector<4x4xf32>
    %c0_3 = arith.constant 0 : index
    %c0_4 = arith.constant 0 : index
    %2 = vector.load %arg3[%c0_3, %c0_4] : memref<4x1xf32, #tpu.memory_space<vmem>>, vector<4x1xf32>
    %3 = vector.extract_strided_slice %1 {offsets = [0, 0], sizes = [4, 1], strides = [1, 1]} : vector<4x4xf32> to vector<4x1xf32>
    %4 = vector.extract_strided_slice %0 {offsets = [0, 0], sizes = [1, 128], strides = [1, 1]} : vector<4x128xf32> to vector<1x128xf32>
    %5 = vector.broadcast %3 : vector<4x1xf32> to vector<4x128xf32>
    %6 = vector.broadcast %4 : vector<1x128xf32> to vector<4x128xf32>
    %7 = arith.mulf %5, %6 : vector<4x128xf32>
    %8 = vector.broadcast %2 : vector<4x1xf32> to vector<4x128xf32>
    %9 = arith.addf %8, %7 : vector<4x128xf32>
    %10 = vector.extract_strided_slice %1 {offsets = [0, 1], sizes = [4, 1], strides = [1, 1]} : vector<4x4xf32> to vector<4x1xf32>
    %11 = vector.extract_strided_slice %0 {offsets = [1, 0], sizes = [1, 128], strides = [1, 1]} : vector<4x128xf32> to vector<1x128xf32>
    %12 = vector.broadcast %10 : vector<4x1xf32> to vector<4x128xf32>
    %13 = vector.broadcast %11 : vector<1x128xf32> to vector<4x128xf32>
    %14 = arith.mulf %12, %13 : vector<4x128xf32>
    %15 = arith.addf %9, %14 : vector<4x128xf32>
    %16 = vector.extract_strided_slice %1 {offsets = [0, 2], sizes = [4, 1], strides = [1, 1]} : vector<4x4xf32> to vector<4x1xf32>
    %17 = vector.extract_strided_slice %0 {offsets = [2, 0], sizes = [1, 128], strides = [1, 1]} : vector<4x128xf32> to vector<1x128xf32>
    %18 = vector.broadcast %16 : vector<4x1xf32> to vector<4x128xf32>
    %19 = vector.broadcast %17 : vector<1x128xf32> to vector<4x128xf32>
    %20 = arith.mulf %18, %19 : vector<4x128xf32>
    %21 = arith.addf %15, %20 : vector<4x128xf32>
    %22 = vector.extract_strided_slice %1 {offsets = [0, 3], sizes = [4, 1], strides = [1, 1]} : vector<4x4xf32> to vector<4x1xf32>
    %23 = vector.extract_strided_slice %0 {offsets = [3, 0], sizes = [1, 128], strides = [1, 1]} : vector<4x128xf32> to vector<1x128xf32>
    %24 = vector.broadcast %22 : vector<4x1xf32> to vector<4x128xf32>
    %25 = vector.broadcast %23 : vector<1x128xf32> to vector<4x128xf32>
    %26 = arith.mulf %24, %25 : vector<4x128xf32>
    %27 = arith.addf %21, %26 : vector<4x128xf32>
    %c0_5 = arith.constant 0 : index
    %c0_6 = arith.constant 0 : index
    %28 = vector.load %arg4[%c0_5, %c0_6] : memref<4x128xf32, #tpu.memory_space<vmem>>, vector<4x128xf32>
    tpu.vector_store %arg4[%c0_5, %c0_6], %27 {strides = array<i32>} : memref<4x128xf32, #tpu.memory_space<vmem>>, vector<4x128xf32>,
    return
  }
  func.func @transform_0(%arg0: i32) -> (i32, i32) {
    %c0_i32 = arith.constant 0 : i32
    %c0_i32_0 = arith.constant 0 : i32
    return %c0_i32, %arg0 : i32, i32
  }
  func.func @transform_1(%arg0: i32) -> (i32, i32) {
    %c0_i32 = arith.constant 0 : i32
    %c0_i32_0 = arith.constant 0 : i32
    %c0_i32_1 = arith.constant 0 : i32
    return %c0_i32, %c0_i32_0 : i32, i32
  }
  func.func @transform_2(%arg0: i32) -> (i32, i32) {
    %c0_i32 = arith.constant 0 : i32
    %c0_i32_0 = arith.constant 0 : i32
    %c0_i32_1 = arith.constant 0 : i32
    return %c0_i32, %c0_i32_0 : i32, i32
  }
  func.func @transform_3(%arg0: i32) -> (i32, i32) {
    %c0_i32 = arith.constant 0 : i32
    %c0_i32_0 = arith.constant 0 : i32
    return %c0_i32, %arg0 : i32, i32
  }
}

</mosaic_0001>

<llo_original>
// kernel: simple_model_forward.1
$region0: #{simple_model_forward.1}
  #allocation0 [shape = 'u32[]', space=smem, size = 0x4, offset = 0x4, fixed_abs, tag = 'smem constant byte address 0x4 - core index']
  #allocation1 [shape = 'u32[144,128]{1,0:T(1,128)}', space=vmem, size = 0x12000, scoped, tag = 'internal scratch']
  %s0 = inlined_call_operand.vmem [shape: f32[4,128], index: 0, kind: input, shape index: {}]
  %s1 = inlined_call_operand.vmem [shape: f32[4,4], index: 1, kind: input, shape index: {}]
  %s2 = inlined_call_operand.vmem [shape: f32[4,1], index: 2, kind: input, shape index: {}]
  %s3 = inlined_call_operand.vmem [shape: f32[4,128], index: 3, kind: output, shape index: {}]
  %s4 = sld [smem:[#allocation0]]
  $region22: #{simple_model_forward.1} parent=0
    _
  %s6 = ssub.s32 1, %s4
  %s7 = scalar_select 0, %s6, %s4
  // Predicated region
  $region2: #{simple_model_forward.1} parent=0 // pred_check
    _
  $region3: #{simple_model_forward.1} parent=0 // pred_check_branch
    %9 = sbr.rel (0) target = $region5
  $region4: #{simple_model_forward.1} parent=0 // pred_region
    _
  $region5: #{simple_model_forward.1} parent=0 // pred_fallthru
    _
  // Predicated region
  $region6: #{simple_model_forward.1} parent=0 // pred_check
    _
  $region7: #{simple_model_forward.1} parent=0 // pred_check_branch
    %11 = sbr.rel (0) target = $region9
  $region8: #{simple_model_forward.1} parent=0 // pred_region
    _
  $region9: #{simple_model_forward.1} parent=0 // pred_fallthru
    _
  // Predicated region
  $region10: #{simple_model_forward.1} parent=0 // pred_check
    _
  $region11: #{simple_model_forward.1} parent=0 // pred_check_branch
    %13 = sbr.rel (0) target = $region13
  $region12: #{simple_model_forward.1} parent=0 // pred_region
    _
  $region13: #{simple_model_forward.1} parent=0 // pred_fallthru
    _
  %v14 = vld [vmem:[%s0] sm:$0xf]
  %v15 = vld [vmem:[%s1] sm:$0xf]
  %v16 = vld [vmem:[%s2] sm:$0xf]
  %18 = vset.pattern.permute.xlu0 0
  %19 = vperm.xlu0 %18, %v15
  %v20 = vpop.permute.xlu0 %19
  %v22 = vlaneseq
  %v23 = vshrl.u32 %v22, 7
  %v24 = vsub.s32 0, %v23
  %v25 = vrot.slane %v14, %v24
  %v26 = vmul.f32 %v20, %v25
  %28 = vset.pattern.permute.xlu0 0
  %29 = vperm.xlu0 %28, %v16
  %v30 = vpop.permute.xlu0 %29
  %v32 = vadd.f32 %v30, %v26
  %33 = vset.pattern.permute.xlu0 1
  %34 = vperm.xlu0 %33, %v15
  %v35 = vpop.permute.xlu0 %34
  %v37 = vlaneseq
  %v38 = vshrl.u32 %v37, 7
  %v39 = vsub.s32 1, %v38
  %v40 = vrot.slane %v14, %v39
  %v41 = vmul.f32 %v35, %v40
  %v42 = vadd.f32 %v32, %v41
  %43 = vset.pattern.permute.xlu0 2
  %44 = vperm.xlu0 %43, %v15
  %v45 = vpop.permute.xlu0 %44
  %v47 = vlaneseq
  %v48 = vshrl.u32 %v47, 7
  %v49 = vsub.s32 2, %v48
  %v50 = vrot.slane %v14, %v49
  %v51 = vmul.f32 %v45, %v50
  %v52 = vadd.f32 %v42, %v51
  %53 = vset.pattern.permute.xlu0 3
  %54 = vperm.xlu0 %53, %v15
  %v55 = vpop.permute.xlu0 %54
  %v57 = vlaneseq
  %v58 = vshrl.u32 %v57, 7
  %v59 = vsub.s32 3, %v58
  %v60 = vrot.slane %v14, %v59
  %v61 = vmul.f32 %v55, %v60
  %v62 = vadd.f32 %v52, %v61
  %63 = vst [vmem:[%s3] sm:$0xf] %v62
  // Predicated region
  $region14: #{simple_model_forward.1} parent=0 // pred_check
    _
  $region15: #{simple_model_forward.1} parent=0 // pred_check_branch
    %65 = sbr.rel (0) target = $region17
  $region16: #{simple_model_forward.1} parent=0 // pred_region
    _
  $region17: #{simple_model_forward.1} parent=0 // pred_fallthru
    _
  // Predicated region
  $region18: #{simple_model_forward.1} parent=0 // pred_check
    _
  $region19: #{simple_model_forward.1} parent=0 // pred_check_branch
    %67 = sbr.rel (0) target = $region21
  $region20: #{simple_model_forward.1} parent=0 // pred_region
    _
  $region21: #{simple_model_forward.1} parent=0 // pred_fallthru
    _

</llo_original>
